<compile_context>
chip_gen: v5e
topology: v5e:2x2
jax: 0.10.0
libtpu: 0.0.40
codegen_flags: <defaults>
</compile_context>

<pallas_src>
import math

import jax
import jax.numpy as jnp
from jax.experimental import pallas as pl
from jax.experimental.pallas import tpu as pltpu


def _round_up(x, m):
    return ((x + m - 1) // m) * m


def _conv1d_im2col_kernel_factory(T_tile, halo_blk, K, dilation, C_in):
    def kernel(xm_ref, xh_ref, w_ref, b_ref, o_ref, xf_ref, col_ref):
        # xm_ref : (1, T_tile, C_in)       main input rows of this output tile
        # xh_ref : (1, halo_blk, C_in)     halo rows immediately after the main rows
        # w_ref  : (K*C_in, C_out_pad)     im2col weight
        # b_ref  : (1, C_out_pad)
        # o_ref  : (1, T_tile, C_out_pad)
        # xf_ref : VMEM scratch (T_tile + halo_blk, C_in)  contiguous input window
        # col_ref: VMEM scratch (T_tile, K*C_in)           im2col activation tile

        # Stitch main + halo rows into one contiguous window (sublane-aligned stores).
        xf_ref[0:T_tile, :] = xm_ref[0]
        xf_ref[T_tile:T_tile + halo_blk, :] = xh_ref[0]

        # Build the im2col tile: one shifted copy per tap, written into its lane range.
        for k in range(K):  # static unroll over kernel taps
            col_ref[:, k * C_in:(k + 1) * C_in] = (
                xf_ref[k * dilation:k * dilation + T_tile, :]
            )

        # Single fused MXU matmul: contraction depth K*C_in, f32 accumulation.
        acc = jnp.dot(col_ref[...], w_ref[...], preferred_element_type=jnp.float32)
        o_ref[0] = (acc + b_ref[...]).astype(o_ref.dtype)

    return kernel


def _choose_time_tile(T_out, C_in, C_out_pad, K, halo_blk, itemsize,
                      vmem_tile_budget=8 * 1024 * 1024, max_tile=2048):
    # VMEM bytes per output row: double-buffered x block + double-buffered out block
    # + (single-buffered) xf/col scratch rows.
    per_row = itemsize * (2 * C_in + 2 * C_out_pad + C_in + K * C_in)
    cap = max(halo_blk, vmem_tile_budget // max(per_row, 1))
    tile = min(max_tile, cap, _round_up(T_out, halo_blk))
    tile = max(halo_blk, (tile // halo_blk) * halo_blk)  # multiple of halo_blk (and 8)
    return tile


def conv_forward(x, weight, bias=None, *, stride=1, padding=0, dilation=1,
                 time_tile=None, compute_dtype=None):
    """Equivalent of Conv.forward: x (B, T, C_in) -> (B, T_out, C_out).

    weight: (K, C_in, C_out), bias: (C_out,) or None.
    compute_dtype: optionally cast x/weight (e.g. jnp.bfloat16) for the MXU;
                   accumulation stays f32.
    """
    # TODO(synk): stride > 1 not implemented in the Pallas kernel (module default is 1).
    assert stride == 1, "only stride=1 supported"
    B, T, C_in = x.shape
    K, w_cin, C_out = weight.shape
    assert w_cin == C_in

    halo = dilation * (K - 1)
    T_out = T + 2 * padding - halo
    assert T_out > 0, "output length must be positive"

    halo_blk = max(8, _round_up(max(halo, 1), 8))
    C_out_pad = _round_up(C_out, 128)

    mxu_dtype = compute_dtype if compute_dtype is not None else x.dtype
    itemsize = jnp.dtype(mxu_dtype).itemsize

    if time_tile is None:
        T_tile = _choose_time_tile(T_out, C_in, C_out_pad, K, halo_blk, itemsize)
    else:
        T_tile = max(halo_blk, _round_up(time_tile, halo_blk))
    n_t = pl.cdiv(T_out, T_tile)
    ratio = T_tile // halo_blk  # halo block index multiplier (T_tile % halo_blk == 0)

    # Boundary handling: zero-pad the time axis so every (main + halo) block is in
    # range.  Total padded length = n_t*T_tile + halo_blk >= T + 2*padding.
    # TODO(synk): this jnp.pad costs one extra HBM round-trip of x; moving the boundary
    # handling fully in-kernel needs element-offset index maps or a manual DMA path.
    T_padded = n_t * T_tile + halo_blk
    x_pad = jnp.pad(x, ((0, 0), (padding, T_padded - padding - T), (0, 0)))

    # Lane-dense weight/bias: pad C_out up to a multiple of 128 and fold K into the
    # contraction axis -> (K*C_in, C_out_pad).
    w_p = jnp.pad(weight, ((0, 0), (0, 0), (0, C_out_pad - C_out)))
    w2d = w_p.reshape(K * C_in, C_out_pad)
    if bias is None:
        bias = jnp.zeros((C_out,), jnp.float32)
    b2d = jnp.pad(bias.astype(jnp.float32), (0, C_out_pad - C_out)).reshape(1, C_out_pad)

    if compute_dtype is not None:
        x_pad = x_pad.astype(compute_dtype)
        w2d = w2d.astype(compute_dtype)

    kernel = _conv1d_im2col_kernel_factory(T_tile, halo_blk, K, dilation, C_in)

    out = pl.pallas_call(
        kernel,
        out_shape=jax.ShapeDtypeStruct((B, n_t * T_tile, C_out_pad), x.dtype),
        grid_spec=pltpu.PrefetchScalarGridSpec(
            num_scalar_prefetch=0,
            grid=(B, n_t),
            in_specs=[
                # main input rows for this (batch, time-tile)
                pl.BlockSpec((1, T_tile, C_in), lambda b, t: (b, t, 0)),
                # small halo block right after the main rows (block-aligned)
                pl.BlockSpec((1, halo_blk, C_in),
                             lambda b, t: (b, (t + 1) * ratio, 0)),
                # weight / bias: constant index map -> fetched once
                pl.BlockSpec((K * C_in, C_out_pad), lambda b, t: (0, 0)),
                pl.BlockSpec((1, C_out_pad), lambda b, t: (0, 0)),
            ],
            out_specs=pl.BlockSpec((1, T_tile, C_out_pad), lambda b, t: (b, t, 0)),
            scratch_shapes=[
                pltpu.VMEM((T_tile + halo_blk, C_in), x_pad.dtype),
                pltpu.VMEM((T_tile, K * C_in), x_pad.dtype),
            ],
        ),
        compiler_params=pltpu.CompilerParams(
            dimension_semantics=("parallel", "parallel"),
            vmem_limit_bytes=48 * 1024 * 1024,  # fits v7x's 64 MiB with headroom
        ),
    )(x_pad, x_pad, w2d, b2d)

    # Drop time/lane padding.
    return out[:, :T_out, :C_out]


def init_conv_params(key, in_channels, out_channels, kernel_size, bias=True):
    """Deterministic Xavier-uniform (gain=1, w_init='linear') init, PyTorch-style fans."""
    wkey, bkey = jax.random.split(key)
    fan_in = in_channels * kernel_size
    fan_out = out_channels * kernel_size
    bound = math.sqrt(6.0 / (fan_in + fan_out))
    # PyTorch weight layout (C_out, C_in, K) -> ours (K, C_in, C_out)
    w_torch = jax.random.uniform(
        wkey, (out_channels, in_channels, kernel_size),
        minval=-bound, maxval=bound, dtype=jnp.float32,
    )
    w = jnp.transpose(w_torch, (2, 1, 0))
    if bias:
        b_bound = 1.0 / math.sqrt(fan_in)
        b = jax.random.uniform(
            bkey, (out_channels,), minval=-b_bound, maxval=b_bound,
            dtype=jnp.float32,
        )
    else:
        b = jnp.zeros((out_channels,), jnp.float32)
    return w, b


def _reference_conv(x, weight, bias, padding, dilation):
    """Pure-JAX reference (lax conv) matching PyTorch Conv1d semantics."""
    x_ncw = jnp.transpose(x, (0, 2, 1))             # (B, C_in, T)
    w_oik = jnp.transpose(weight, (2, 1, 0))        # (C_out, C_in, K)
    y = jax.lax.conv_general_dilated(
        x_ncw, w_oik,
        window_strides=(1,),
        padding=[(padding, padding)],
        rhs_dilation=(dilation,),
        dimension_numbers=("NCH", "OIH", "NCH"),
    )
    y = y + bias[None, :, None]
    return jnp.transpose(y, (0, 2, 1))


if __name__ == "__main__":
    key = jax.random.PRNGKey(0)

    configs = [
        # (B, T, C_in, C_out, K, padding, dilation, time_tile)
        (2, 16, 8, 16, 3, 1, 1, None),   # module-default-style small conv
        (2, 24, 8, 32, 5, 4, 2, None),   # dilated conv, larger halo
        (2, 40, 8, 16, 3, 1, 1, 8),      # forces multiple time tiles (halo path)
    ]

    for idx, (B, T, C_in, C_out, K, padding, dilation, time_tile) in enumerate(configs):
        xkey, pkey = jax.random.split(jax.random.fold_in(key, idx))
        x = jax.random.normal(xkey, (B, T, C_in), dtype=jnp.float32)
        weight, bias = init_conv_params(pkey, C_in, C_out, K, bias=True)

        y = conv_forward(x, weight, bias, stride=1, padding=padding,
                         dilation=dilation, time_tile=time_tile)
        y = jax.block_until_ready(y)

        y_ref = _reference_conv(x, weight, bias, padding, dilation)
        assert y.shape == y_ref.shape, (y.shape, y_ref.shape)
        max_err = float(jnp.max(jnp.abs(y - y_ref)))
        assert jnp.allclose(y, y_ref, atol=1e-4, rtol=1e-4), max_err

    print("KERNEL_OK")
</pallas_src>

<mosaic_0001>
module attributes {stable_mosaic.version = 11 : i64} {
  func.func @kernel(%arg0: i32, %arg1: i32, %arg2: memref<1x16x8xf32, #tpu.memory_space<vmem>>, %arg3: memref<1x8x8xf32, #tpu.memory_space<vmem>>, %arg4: memref<24x128xf32, #tpu.memory_space<vmem>>, %arg5: memref<1x128xf32, #tpu.memory_space<vmem>>, %arg6: memref<1x16x128xf32, #tpu.memory_space<vmem>>, %arg7: memref<24x8xf32, #tpu.memory_space<vmem>>, %arg8: memref<16x24xf32, #tpu.memory_space<vmem>>) attributes {dimension_semantics = [#tpu.dimension_semantics<parallel>, #tpu.dimension_semantics<parallel>], iteration_bounds = array<i64: 2, 1>, scalar_prefetch = 0 : i64, scratch_operands = 2 : i64, tpu.core_type = #tpu.core_type<tc>, window_params = [{transform_indices = @transform_0, window_bounds = array<i64: 1, 16, 8>}, {transform_indices = @transform_1, window_bounds = array<i64: 1, 8, 8>}, {pipeline_mode = #tpu.pipeline_mode<synchronous>, transform_indices = @transform_2, window_bounds = array<i64: 24, 128>}, {pipeline_mode = #tpu.pipeline_mode<synchronous>, transform_indices = @transform_3, window_bounds = array<i64: 1, 128>}, {transform_indices = @transform_4, window_bounds = array<i64: 1, 16, 128>}]} {
    %c0 = arith.constant 0 : index
    %c0_0 = arith.constant 0 : index
    %c0_1 = arith.constant 0 : index
    %0 = vector.load %arg2[%c0, %c0_0, %c0_1] : memref<1x16x8xf32, #tpu.memory_space<vmem>>, vector<1x16x8xf32>
    %1 = vector.shape_cast %0 : vector<1x16x8xf32> to vector<16x8xf32>
    %c0_2 = arith.constant 0 : index
    %c0_3 = arith.constant 0 : index
    %2 = vector.load %arg7[%c0_2, %c0_3] : memref<24x8xf32, #tpu.memory_space<vmem>>, vector<16x8xf32>
    tpu.vector_store %arg7[%c0_2, %c0_3], %1 {strides = array<i32>} : memref<24x8xf32, #tpu.memory_space<vmem>>, vector<16x8xf32>,
    %c0_4 = arith.constant 0 : index
    %c0_5 = arith.constant 0 : index
    %c0_6 = arith.constant 0 : index
    %3 = vector.load %arg3[%c0_4, %c0_5, %c0_6] : memref<1x8x8xf32, #tpu.memory_space<vmem>>, vector<1x8x8xf32>
    %4 = vector.shape_cast %3 : vector<1x8x8xf32> to vector<8x8xf32>
    %c16 = arith.constant 16 : index
    %c0_7 = arith.constant 0 : index
    %5 = vector.load %arg7[%c16, %c0_7] : memref<24x8xf32, #tpu.memory_space<vmem>>, vector<8x8xf32>
    tpu.vector_store %arg7[%c16, %c0_7], %4 {strides = array<i32>} : memref<24x8xf32, #tpu.memory_space<vmem>>, vector<8x8xf32>,
    %c0_8 = arith.constant 0 : index
    %c0_9 = arith.constant 0 : index
    %6 = vector.load %arg7[%c0_8, %c0_9] : memref<24x8xf32, #tpu.memory_space<vmem>>, vector<16x8xf32>
    %c0_10 = arith.constant 0 : index
    %c0_11 = arith.constant 0 : index
    %7 = vector.load %arg8[%c0_10, %c0_11] : memref<16x24xf32, #tpu.memory_space<vmem>>, vector<16x8xf32>
    tpu.vector_store %arg8[%c0_10, %c0_11], %6 {strides = array<i32>} : memref<16x24xf32, #tpu.memory_space<vmem>>, vector<16x8xf32>,
    %c1 = arith.constant 1 : index
    %c0_12 = arith.constant 0 : index
    %8 = vector.load %arg7[%c1, %c0_12] : memref<24x8xf32, #tpu.memory_space<vmem>>, vector<16x8xf32>
    %c0_13 = arith.constant 0 : index
    %c8 = arith.constant 8 : index
    %9 = vector.load %arg8[%c0_13, %c8] : memref<16x24xf32, #tpu.memory_space<vmem>>, vector<16x8xf32>
    tpu.vector_store %arg8[%c0_13, %c8], %8 {strides = array<i32>} : memref<16x24xf32, #tpu.memory_space<vmem>>, vector<16x8xf32>,
    %c2 = arith.constant 2 : index
    %c0_14 = arith.constant 0 : index
    %10 = vector.load %arg7[%c2, %c0_14] : memref<24x8xf32, #tpu.memory_space<vmem>>, vector<16x8xf32>
    %c0_15 = arith.constant 0 : index
    %c16_16 = arith.constant 16 : index
    %11 = vector.load %arg8[%c0_15, %c16_16] : memref<16x24xf32, #tpu.memory_space<vmem>>, vector<16x8xf32>
    tpu.vector_store %arg8[%c0_15, %c16_16], %10 {strides = array<i32>} : memref<16x24xf32, #tpu.memory_space<vmem>>, vector<16x8xf32>,
    %c0_17 = arith.constant 0 : index
    %c0_18 = arith.constant 0 : index
    %12 = vector.load %arg8[%c0_17, %c0_18] : memref<16x24xf32, #tpu.memory_space<vmem>>, vector<16x24xf32>
    %c0_19 = arith.constant 0 : index
    %c0_20 = arith.constant 0 : index
    %13 = vector.load %arg4[%c0_19, %c0_20] : memref<24x128xf32, #tpu.memory_space<vmem>>, vector<24x128xf32>
    %cst = arith.constant dense<0.000000e+00> : vector<16x128xf32>
    %14 = tpu.matmul %12, %13, %cst {dimension_numbers = #tpu.dot_dimension_numbers<[1], [0], [0], [1], [0, 0, 1, 1], [], []>} : vector<16x24xf32>, vector<24x128xf32>, vector<16x128xf32> -> vector<16x128xf32>
    %c0_21 = arith.constant 0 : index
    %c0_22 = arith.constant 0 : index
    %15 = vector.load %arg5[%c0_21, %c0_22] : memref<1x128xf32, #tpu.memory_space<vmem>>, vector<1x128xf32>
    %16 = vector.broadcast %15 : vector<1x128xf32> to vector<16x128xf32>
    %17 = arith.addf %14, %16 : vector<16x128xf32>
    %c0_23 = arith.constant 0 : index
    %c0_24 = arith.constant 0 : index
    %c0_25 = arith.constant 0 : index
    %18 = vector.load %arg6[%c0_23, %c0_24, %c0_25] : memref<1x16x128xf32, #tpu.memory_space<vmem>>, vector<1x16x128xf32>
    %19 = vector.shape_cast %18 : vector<1x16x128xf32> to vector<16x128xf32>
    %20 = vector.shape_cast %17 : vector<16x128xf32> to vector<1x16x128xf32>
    tpu.vector_store %arg6[%c0_23, %c0_24, %c0_25], %20 {strides = array<i32>} : memref<1x16x128xf32, #tpu.memory_space<vmem>>, vector<1x16x128xf32>,
    return
  }
  func.func @transform_0(%arg0: i32, %arg1: i32) -> (i32, i32, i32) {
    %c0_i32 = arith.constant 0 : i32
    %c0_i32_0 = arith.constant 0 : i32
    return %arg0, %arg1, %c0_i32 : i32, i32, i32
  }
  func.func @transform_1(%arg0: i32, %arg1: i32) -> (i32, i32, i32) {
    %c1_i32 = arith.constant 1 : i32
    %0 = arith.addi %arg1, %c1_i32 : i32
    %c2_i32 = arith.constant 2 : i32
    %1 = arith.muli %0, %c2_i32 : i32
    %c0_i32 = arith.constant 0 : i32
    %c0_i32_0 = arith.constant 0 : i32
    return %arg0, %1, %c0_i32 : i32, i32, i32
  }
  func.func @transform_2(%arg0: i32, %arg1: i32) -> (i32, i32) {
    %c0_i32 = arith.constant 0 : i32
    %c0_i32_0 = arith.constant 0 : i32
    %c0_i32_1 = arith.constant 0 : i32
    return %c0_i32, %c0_i32_0 : i32, i32
  }
  func.func @transform_3(%arg0: i32, %arg1: i32) -> (i32, i32) {
    %c0_i32 = arith.constant 0 : i32
    %c0_i32_0 = arith.constant 0 : i32
    %c0_i32_1 = arith.constant 0 : i32
    return %c0_i32, %c0_i32_0 : i32, i32
  }
  func.func @transform_4(%arg0: i32, %arg1: i32) -> (i32, i32, i32) {
    %c0_i32 = arith.constant 0 : i32
    %c0_i32_0 = arith.constant 0 : i32
    return %arg0, %arg1, %c0_i32 : i32, i32, i32
  }
}

</mosaic_0001>

<llo_original>
// kernel: tpu_custom_call.1
$region0: #{tpu_custom_call.1}
  #allocation0 [shape = 'u32[]', space=smem, size = 0x4, offset = 0x4, fixed_abs, tag = 'smem constant byte address 0x4 - core index']
  #allocation1 [shape = 'u32[72,128]{1,0:T(1,128)}', space=vmem, size = 0x9000, scoped, tag = 'internal scratch']
  #allocation2 [shape = 'f32[24,8]{1,0:T(8,128)}', space=vmem, size = 0x3000, scoped, tag = 'scratch operand']
  #allocation3 [shape = 'f32[16,24]{1,0:T(8,128)}', space=vmem, size = 0x2000, scoped, tag = 'scratch operand']
  %s0 = inlined_call_operand.vmem [shape: f32[2,24,8], index: 0, kind: input, shape index: {}]
  %s1 = inlined_call_operand.vmem [shape: f32[2,24,8], index: 1, kind: input, shape index: {}]
  %s2 = inlined_call_operand.vmem [shape: f32[24,128], index: 2, kind: input, shape index: {}]
  %s3 = inlined_call_operand.vmem [shape: f32[1,128], index: 3, kind: input, shape index: {}]
  %s4 = inlined_call_operand.hbm [shape: f32[2,16,128], index: 4, kind: output, shape index: {}]
  %s5 = sld [smem:[#allocation0]]
  $region49: #{tpu_custom_call.1} parent=0
    _
  %s7 = ssub.s32 1, %s5
  %s8 = scalar_select 0, %s7, %s5
  $region1: #{tpu_custom_call.1} parent=0
    #allocation4 [shape = 'u8[16384]{0}', space=vmem, size = 0x4000, scoped, tag = 'output window, operand 0']
    #allocation5 [shape = 's32[2]{0}', space=sflag, size = 0x8, scoped, tag = 'scoped memory for tpu_custom_call.1']
    %9 = vsyncpa [#allocation5], 0
    %s10 = scalar_lea.sflag [#allocation5], 1
    %11 = vsyncpa %s10, 0
    loop: start=0, step=1, limit=4
    $region2: #{tpu_custom_call.1} parent=1 // loop_pre_header
      _
    $region3: #{tpu_custom_call.1} parent=1 // loop_header
      %s13 = sphi 0, %s17
      %p14 = scmp.ge.s32.totalorder %s13, 4
      %s20 = sphi 0, %s32
      %s21 = sphi 0, %s28
      %s22 = sphi 0, %s20
      %s23 = sphi 0, %s21
      %s24 = sphi 0, %s22
      %s25 = sphi 0, %s23
      %s37 = sphi 0, %s39
      %s40 = sphi 0, %s37
      %s41 = sphi 0, %s40
      %s57 = sphi 0, %s41
      %s69 = sphi 0, %s71
      %s72 = sphi 0, %s69
      %s73 = sphi 0, %s72
      %s89 = sphi 0, %s73
      %s93 = sphi 0, %s93
      %s95 = sphi 0, %s93
      %s96 = sphi 0, %s95
      %s110 = sphi 0, %s96
      %s114 = sphi 0, %s114
      %s116 = sphi 0, %s114
      %s117 = sphi 0, %s116
      %s131 = sphi 0, %s117
      %s139 = sphi 0, %s141
      %s142 = sphi 0, %s139
      %s143 = sphi 0, %s142
      %s159 = sphi 0, %s143
    $region4: #{tpu_custom_call.1} parent=1 // loop_header_branch
      %16 = sbr.rel (%p14) target = $region8
    $region5: #{tpu_custom_call.1} parent=1 // loop_body
      %s18 = ssub.s32 %s13, 1
      %s19 = ssub.s32 %s13, 2
      %s26 = sadd.s32 1, %s21
      %p27 = scmp.ge.s32.totalorder %s26, 1
      %s28 = scalar_select %p27, 0, %s26
      %s29 = sadd.s32 1, %s20
      %s30 = scalar_select %p27, %s29, %s20
      %p31 = scmp.ge.s32.totalorder %s30, 2
      %s32 = scalar_select %p31, 0, %s30
      %s33 = ssub.s32 %s20, %s32
      %s34 = ssub.s32 %s21, %s28
      %s35 = sor.u32 %s33, %s34
      %p36 = scmp.eq.s32.totalorder %s35, 0
      %s38 = sadd.s32 %s37, 1
      %s39 = scalar_select %p36, %s37, %s38
      %p42 = pneg %p36
      %p43 = scmp.eq.s32.totalorder %s13, 1
      %p44 = por %p42, %p43
      %p45 = scmp.ne.s32.totalorder %s37, %s40
      %p46 = scmp.eq.s32.totalorder %s13, 0
      %p47 = por %p45, %p46
      %p48 = scmp.ne.s32.totalorder %s37, %s40
      %p49 = scmp.eq.s32.totalorder %s18, 1
      %p50 = por %p48, %p49
      %p51 = scmp.ne.s32.totalorder %s40, %s41
      %p52 = scmp.eq.s32.totalorder %s18, 0
      %p53 = por %p51, %p52
      %p54 = scmp.ne.s32.totalorder %s40, %s41
      %p55 = scmp.eq.s32.totalorder %s19, 1
      %p56 = por %p54, %p55
      %p58 = scmp.ne.s32.totalorder %s41, %s57
      %p59 = scmp.eq.s32.totalorder %s19, 0
      %p60 = por %p58, %p59
      %s61 = sadd.s32 %s21, 1
      %s62 = smul.u32 %s61, 2
      %s63 = sadd.s32 %s28, 1
      %s64 = smul.u32 %s63, 2
      %s65 = ssub.s32 %s20, %s32
      %s66 = ssub.s32 %s62, %s64
      %s67 = sor.u32 %s65, %s66
      %p68 = scmp.eq.s32.totalorder %s67, 0
      %s70 = sadd.s32 %s69, 1
      %s71 = scalar_select %p68, %s69, %s70
      %p74 = pneg %p68
      %p75 = scmp.eq.s32.totalorder %s13, 1
      %p76 = por %p74, %p75
      %p77 = scmp.ne.s32.totalorder %s69, %s72
      %p78 = scmp.eq.s32.totalorder %s13, 0
      %p79 = por %p77, %p78
      %p80 = scmp.ne.s32.totalorder %s69, %s72
      %p81 = scmp.eq.s32.totalorder %s18, 1
      %p82 = por %p80, %p81
      %p83 = scmp.ne.s32.totalorder %s72, %s73
      %p84 = scmp.eq.s32.totalorder %s18, 0
      %p85 = por %p83, %p84
      %p86 = scmp.ne.s32.totalorder %s72, %s73
      %p87 = scmp.eq.s32.totalorder %s19, 1
      %p88 = por %p86, %p87
      %p90 = scmp.ne.s32.totalorder %s73, %s89
      %p91 = scmp.eq.s32.totalorder %s19, 0
      %p92 = por %p90, %p91
      %s94 = sadd.s32 %s93, 1
      %p97 = scmp.eq.s32.totalorder %s13, 1
      %p98 = scmp.ne.s32.totalorder %s93, %s95
      %p99 = scmp.eq.s32.totalorder %s13, 0
      %p100 = por %p98, %p99
      %p101 = scmp.ne.s32.totalorder %s93, %s95
      %p102 = scmp.eq.s32.totalorder %s18, 1
      %p103 = por %p101, %p102
      %p104 = scmp.ne.s32.totalorder %s95, %s96
      %p105 = scmp.eq.s32.totalorder %s18, 0
      %p106 = por %p104, %p105
      %p107 = scmp.ne.s32.totalorder %s95, %s96
      %p108 = scmp.eq.s32.totalorder %s19, 1
      %p109 = por %p107, %p108
      %p111 = scmp.ne.s32.totalorder %s96, %s110
      %p112 = scmp.eq.s32.totalorder %s19, 0
      %p113 = por %p111, %p112
      %s115 = sadd.s32 %s114, 1
      %p118 = scmp.eq.s32.totalorder %s13, 1
      %p119 = scmp.ne.s32.totalorder %s114, %s116
      %p120 = scmp.eq.s32.totalorder %s13, 0
      %p121 = por %p119, %p120
      %p122 = scmp.ne.s32.totalorder %s114, %s116
      %p123 = scmp.eq.s32.totalorder %s18, 1
      %p124 = por %p122, %p123
      %p125 = scmp.ne.s32.totalorder %s116, %s117
      %p126 = scmp.eq.s32.totalorder %s18, 0
      %p127 = por %p125, %p126
      %p128 = scmp.ne.s32.totalorder %s116, %s117
      %p129 = scmp.eq.s32.totalorder %s19, 1
      %p130 = por %p128, %p129
      %p132 = scmp.ne.s32.totalorder %s117, %s131
      %p133 = scmp.eq.s32.totalorder %s19, 0
      %p134 = por %p132, %p133
      %s135 = ssub.s32 %s20, %s32
      %s136 = ssub.s32 %s21, %s28
      %s137 = sor.u32 %s135, %s136
      %p138 = scmp.eq.s32.totalorder %s137, 0
      %s140 = sadd.s32 %s139, 1
      %s141 = scalar_select %p138, %s139, %s140
      %p144 = pneg %p138
      %p145 = scmp.eq.s32.totalorder %s13, 1
      %p146 = por %p144, %p145
      %p147 = scmp.ne.s32.totalorder %s139, %s142
      %p148 = scmp.eq.s32.totalorder %s13, 0
      %p149 = por %p147, %p148
      %p150 = scmp.ne.s32.totalorder %s139, %s142
      %p151 = scmp.eq.s32.totalorder %s18, 1
      %p152 = por %p150, %p151
      %p153 = scmp.ne.s32.totalorder %s142, %s143
      %p154 = scmp.eq.s32.totalorder %s18, 0
      %p155 = por %p153, %p154
      %p156 = scmp.ne.s32.totalorder %s142, %s143
      %p157 = scmp.eq.s32.totalorder %s19, 1
      %p158 = por %p156, %p157
      %p160 = scmp.ne.s32.totalorder %s143, %s159
      %p161 = scmp.eq.s32.totalorder %s19, 0
      %p162 = por %p160, %p161
      %p163 = scmp.le.s32.totalorder 1, %s13
      %p164 = scmp.lt.s32.totalorder %s13, 3
      %p165 = pnand %p163, %p164
      %p166 = pneg %p165
      // Predicated region
      $region9: #{tpu_custom_call.1} parent=5 // pred_check
        _
      $region10: #{tpu_custom_call.1} parent=5 // pred_check_branch
        %168 = sbr.rel (%p165) target = $region12
      $region11: #{tpu_custom_call.1} parent=5 // pred_region
        %s169 = ssub.s32 %s13, 1
        // Predicated region
        $region13: #{tpu_custom_call.1} parent=11 // pred_check
          %p170 = pneg %p106
        $region14: #{tpu_custom_call.1} parent=11 // pred_check_branch
          %172 = sbr.rel (%p170) target = $region16
        $region15: #{tpu_custom_call.1} parent=11 // pred_region
          _
        $region16: #{tpu_custom_call.1} parent=11 // pred_fallthru
          _
        // Predicated region
        $region17: #{tpu_custom_call.1} parent=11 // pred_check
          %p173 = pneg %p127
        $region18: #{tpu_custom_call.1} parent=11 // pred_check_branch
          %175 = sbr.rel (%p173) target = $region20
        $region19: #{tpu_custom_call.1} parent=11 // pred_region
          _
        $region20: #{tpu_custom_call.1} parent=11 // pred_fallthru
          _
      $region12: #{tpu_custom_call.1} parent=5 // pred_fallthru
        _
      %p176 = scmp.lt.s32.totalorder %s13, 2
      // Predicated region
      $region21: #{tpu_custom_call.1} parent=5 // pred_check
        %p177 = pneg %p176
      $region22: #{tpu_custom_call.1} parent=5 // pred_check_branch
        %179 = sbr.rel (%p177) target = $region24
      $region23: #{tpu_custom_call.1} parent=5 // pred_region
        // Predicated region
        $region25: #{tpu_custom_call.1} parent=23 // pred_check
          %p180 = pneg %p47
        $region26: #{tpu_custom_call.1} parent=23 // pred_check_branch
          %182 = sbr.rel (%p180) target = $region28
        $region27: #{tpu_custom_call.1} parent=23 // pred_region
          %s183 = smul.u32 2, %s21
          %s184 = ssub.s32 3, %s183
          %p185 = scmp.lt.s32.totalorder %s184, 2
          %s186 = scalar_select %p185, %s184, 2
          %s187 = smul.u32 8, %s186
          %p188 = scmp.lt.s32.totalorder %s20, 1
          %s189 = scalar_select %p188, %s20, 1
          %p190 = scmp.lt.s32.totalorder %s183, 2
          %s191 = scalar_select %p190, %s183, 2
          %s192 = smul.addr %s189, 3
          %s193 = sadd.s32 %s191, %s192
          %s194 = smul.addr %s193, 8
          %s195 = scalar_lea.vmem %s0, %s194
          %s196 = smul.u32 2, %s21
          %s197 = ssub.s32 3, %s196
          %p198 = scmp.lt.s32.totalorder %s197, 2
          %s199 = scalar_select %p198, %s197, 2
          %s200 = smul.u32 8, %s199
        $region28: #{tpu_custom_call.1} parent=23 // pred_fallthru
          _
        // Predicated region
        $region29: #{tpu_custom_call.1} parent=23 // pred_check
          %p201 = pneg %p79
        $region30: #{tpu_custom_call.1} parent=23 // pred_check_branch
          %203 = sbr.rel (%p201) target = $region32
        $region31: #{tpu_custom_call.1} parent=23 // pred_region
          %s204 = sadd.s32 %s21, 1
          %s205 = smul.u32 %s204, 2
          %p206 = scmp.lt.s32.totalorder %s20, 1
          %s207 = scalar_select %p206, %s20, 1
          %p208 = scmp.lt.s32.totalorder %s205, 2
          %s209 = scalar_select %p208, %s205, 2
          %s210 = smul.addr %s207, 3
          %s211 = sadd.s32 %s209, %s210
          %s212 = smul.addr %s211, 8
          %s213 = scalar_lea.vmem %s1, %s212
          %s214 = sadd.s32 %s21, 1
          %s215 = smul.u32 %s214, 2
        $region32: #{tpu_custom_call.1} parent=23 // pred_fallthru
          _
      $region24: #{tpu_custom_call.1} parent=5 // pred_fallthru
        _
      %p216 = scmp.le.s32.totalorder 1, %s13
      %p217 = scmp.lt.s32.totalorder %s13, 3
      %p218 = pnand %p216, %p217
      %p219 = pneg %p218
      // Predicated region
      $region33: #{tpu_custom_call.1} parent=5 // pred_check
        _
      $region34: #{tpu_custom_call.1} parent=5 // pred_check_branch
        %221 = sbr.rel (%p218) target = $region36
      $region35: #{tpu_custom_call.1} parent=5 // pred_region
        %s222 = ssub.s32 %s13, 1
        %s223 = smul.u32 2, %s23
        %s224 = ssub.s32 3, %s223
        %p225 = scmp.lt.s32.totalorder %s224, 2
        %s226 = scalar_select %p225, %s224, 2
        %s227 = smul.u32 8, %s226
        %p228 = scmp.lt.s32.totalorder %s22, 1
        %s229 = scalar_select %p228, %s22, 1
        %p230 = scmp.lt.s32.totalorder %s223, 2
        %s231 = scalar_select %p230, %s223, 2
        %s232 = smul.addr %s229, 3
        %s233 = sadd.s32 %s231, %s232
        %s234 = smul.addr %s233, 8
        %s235 = scalar_lea.vmem %s0, %s234
        %p236 = pneg %p53
        %p237 = pneg %p50
        %s238 = sadd.s32 %s23, 1
        %s239 = smul.u32 %s238, 2
        %p240 = scmp.lt.s32.totalorder %s22, 1
        %s241 = scalar_select %p240, %s22, 1
        %p242 = scmp.lt.s32.totalorder %s239, 2
        %s243 = scalar_select %p242, %s239, 2
        %s244 = smul.addr %s241, 3
        %s245 = sadd.s32 %s243, %s244
        %s246 = smul.addr %s245, 8
        %s247 = scalar_lea.vmem %s1, %s246
        %p248 = pneg %p85
        %p249 = pneg %p82
        %p250 = pneg %p106
        %p251 = pneg %p103
        %p252 = pneg %p127
        %p253 = pneg %p124
        %p254 = pneg %p155
        %p255 = pneg %p152
        %s256 = sand.u32 %s142, 1
        %s257 = scalar_lea.sflag [#allocation5], %s256
        %s258 = sand.u32 %s142, 1
        %s259 = smul.addr %s258, 16
        %s260 = scalar_lea.vmem [#allocation4], %s259
        %s261 = smul.u32 2, %s23
        %s262 = ssub.s32 3, %s261
        %p263 = scmp.lt.s32.totalorder %s262, 2
        %s264 = scalar_select %p263, %s262, 2
        %s265 = smul.u32 8, %s264
        %p266 = scmp.lt.s32.totalorder %s22, 1
        %s267 = scalar_select %p266, %s22, 1
        %p268 = scmp.lt.s32.totalorder %s261, 2
        %s269 = scalar_select %p268, %s261, 2
        %s270 = smul.addr %s267, 3
        %s271 = sadd.s32 %s269, %s270
        %s272 = smul.addr %s271, 8
        %s273 = scalar_lea.vmem %s0, %s272
        %s274 = smul.u32 2, %s23
        %s275 = ssub.s32 3, %s274
        %p276 = scmp.lt.s32.totalorder %s275, 2
        %s277 = scalar_select %p276, %s275, 2
        %s278 = smul.u32 8, %s277
        %s279 = sadd.s32 %s23, 1
        %s280 = smul.u32 %s279, 2
        %p281 = scmp.lt.s32.totalorder %s22, 1
        %s282 = scalar_select %p281, %s22, 1
        %p283 = scmp.lt.s32.totalorder %s280, 2
        %s284 = scalar_select %p283, %s280, 2
        %s285 = smul.addr %s282, 3
        %s286 = sadd.s32 %s284, %s285
        %s287 = smul.addr %s286, 8
        %s288 = scalar_lea.vmem %s1, %s287
        %s289 = sadd.s32 %s23, 1
        %s290 = smul.u32 %s289, 2
        %s291 = smul.u32 2, %s23
        %v292 = vld [vmem:[%s273] sm:$0xff]
        %v293 = vld [vmem:[%s273 + $0x8] sm:$0xff]
        %vm294 = vcmask 64512
        %295 = vst.msk [vmem:[#allocation2] sm:$0xff] %vm294, %v292
        %296 = vst.msk [vmem:[#allocation2 + $0x8] sm:$0xff] %vm294, %v293
        %v297 = vld [vmem:[%s288] sm:$0xff]
        %298 = vst.msk [vmem:[#allocation2 + $0x10] sm:$0xff] %vm294, %v297
        %v299 = vld [vmem:[#allocation2] sm:$0xff]
        %v300 = vld [vmem:[#allocation2 + $0x8] sm:$0xff]
        %301 = vst.msk [vmem:[#allocation3] sm:$0xff] %vm294, %v299
        %302 = vst.msk [vmem:[#allocation3 + $0x8] sm:$0xff] %vm294, %v300
        %v303 = vld [vmem:[#allocation2 + $0x1] sm:$0xff]
        %v304 = vld [vmem:[#allocation2 + $0x9] sm:$0xff]
        %307 = vrot.lane.b32.xlu0 %v303, 8
        %v308 = vpop.permute.xlu0 %307
        %309 = vrot.lane.b32.xlu0 %v304, 8
        %v310 = vpop.permute.xlu0 %309
        %vm313 = vcmask 130112
        %314 = vst.msk [vmem:[#allocation3] sm:$0xff] %vm313, %v308
        %315 = vst.msk [vmem:[#allocation3 + $0x8] sm:$0xff] %vm313, %v310
        %v316 = vld [vmem:[#allocation2 + $0x2] sm:$0xff]
        %v317 = vld [vmem:[#allocation2 + $0xa] sm:$0xff]
        %320 = vrot.lane.b32.xlu0 %v316, 16
        %v321 = vpop.permute.xlu0 %320
        %322 = vrot.lane.b32.xlu0 %v317, 16
        %v323 = vpop.permute.xlu0 %322
        %vm326 = vcmask 195712
        %327 = vst.msk [vmem:[#allocation3] sm:$0xff] %vm326, %v321
        %328 = vst.msk [vmem:[#allocation3 + $0x8] sm:$0xff] %vm326, %v323
        %v329 = vld [vmem:[#allocation3] sm:$0xff]
        %v330 = vld [vmem:[#allocation3 + $0x8] sm:$0xff]
        %v331 = vld [vmem:[%s2] sm:$0xff]
        %v332 = vld [vmem:[%s2 + $0x8] sm:$0xff]
        %v333 = vld [vmem:[%s2 + $0x10] sm:$0xff]
        %v334 = vld [vmem:[%s3] sm:$0x1]
        %v336 = vperm.slane %v334, 0
        %vm338 = vcmask 195584
        %v340 = vsel %vm338, %v329, 0
        %v343 = vsel %vm338, %v330, 0
        %345 = vmatpush.msra.mxu0 0.0
        %346 = vmatpush.msra.mxu0 0.0
        %347 = vmatpush.msra.mxu0 0.0
        %348 = vmatpush.msra.mxu0 0.0
        %349 = vmatpush.msra.mxu0 0.0
        %350 = vmatpush.msra.mxu0 0.0
        %351 = vmatpush.msra.mxu0 0.0
        %352 = vmatpush.msra.mxu0 0.0
        %353 = vmatpush.msra.mxu0 0.0
        %354 = vmatpush.msra.mxu0 0.0
        %355 = vmatpush.msra.mxu0 0.0
        %356 = vmatpush.msra.mxu0 0.0
        %357 = vmatpush.msra.mxu0 0.0
        %358 = vmatpush.msra.mxu0 %v333
        %359 = vmatpush.msra.mxu0 %v332
        %360 = vmatpush.msra.mxu0 %v331
        %361 = vmatmul.f32.gmra.mxu0 %v340
        %v362 = vpop.f32.mrf.mxu0
        %v363 = vadd.f32 %v336, %v362
        %364 = vmatmul.f32.gmra.mxu0 %v343
        %v365 = vpop.f32.mrf.mxu0
        %v366 = vadd.f32 %v336, %v365
        %367 = vdwg.mxu0
        %368 = vst [vmem:[%s260] sm:$0xff] %v363
        %369 = vst [vmem:[%s260 + $0x8] sm:$0xff] %v366
        %s370 = sand.u32 %s142, 1
        %s371 = scalar_lea.sflag [#allocation5], %s370
        %s372 = sand.u32 %s142, 1
        %s373 = smul.addr %s372, 16
        %s374 = scalar_lea.vmem [#allocation4], %s373
        // Predicated region
        $region37: #{tpu_custom_call.1} parent=35 // pred_check
          %p375 = pneg %p152
        $region38: #{tpu_custom_call.1} parent=35 // pred_check_branch
          %377 = sbr.rel (%p375) target = $region40
        $region39: #{tpu_custom_call.1} parent=35 // pred_region
          %s378 = smul.u32 2, %s23
          %380 = vsyncadd %s371, 0
          %s381 = smul.addr %s22, 2
          %s382 = sadd.s32 %s378, %s381
          %s383 = smul.addr %s382, 8
          %s384 = scalar_lea.hbm %s4, %s383
          %s385 = sshll.u32 %s374, 4
          %s386 = int_to_ptr.vmem [resolvable:$true] %s385
          %s387 = sshll.u32 %s384, 4
          %s388 = int_to_ptr.hbm [resolvable:$true] %s387
          %393 = dma.vmem_to_hbm [thread:$0]  %s386, 256, %s388, %s371, 128, 128, 8
        $region40: #{tpu_custom_call.1} parent=35 // pred_fallthru
          _
      $region36: #{tpu_custom_call.1} parent=5 // pred_fallthru
        _
      %p394 = scmp.le.s32.totalorder 2, %s13
      // Predicated region
      $region41: #{tpu_custom_call.1} parent=5 // pred_check
        %p395 = pneg %p394
      $region42: #{tpu_custom_call.1} parent=5 // pred_check_branch
        %397 = sbr.rel (%p395) target = $region44
      $region43: #{tpu_custom_call.1} parent=5 // pred_region
        %s398 = ssub.s32 %s13, 2
        // Predicated region
        $region45: #{tpu_custom_call.1} parent=43 // pred_check
          %p399 = pneg %p158
        $region46: #{tpu_custom_call.1} parent=43 // pred_check_branch
          %401 = sbr.rel (%p399) target = $region48
        $region47: #{tpu_custom_call.1} parent=43 // pred_region
          %s402 = sand.u32 %s143, 1
          %s403 = scalar_lea.sflag [#allocation5], %s402
          %s404 = sand.u32 %s143, 1
          %s405 = smul.addr %s404, 16
          %s406 = scalar_lea.vmem [#allocation4], %s405
          %408 = dma.done %s403, 256
        $region48: #{tpu_custom_call.1} parent=43 // pred_fallthru
          _
      $region44: #{tpu_custom_call.1} parent=5 // pred_fallthru
        _
    $region6: #{tpu_custom_call.1} parent=1 // loop_footer
      %s17 = sadd.s32 1, %s13
    $region7: #{tpu_custom_call.1} parent=1 // loop_footer_branch
      %12 = sbr.rel target = $region3
    $region8: #{tpu_custom_call.1} parent=1 // loop_exit
      _
    %409 = vsyncpa [#allocation5], 1
    %s410 = scalar_lea.sflag [#allocation5], 1
    %411 = vsyncpa %s410, 1

</llo_original>
